<compile_context>
chip_gen: v6e
topology: v6e:2x2x1
jax: 0.10.0
libtpu: 0.0.40
codegen_flags: <defaults>
</compile_context>

<pallas_src>
import jax
import jax.numpy as jnp
from jax import lax
from jax.experimental import pallas as pl
from jax.experimental.pallas import tpu as pltpu

LANE = 128               # lane width of a vreg
SUBLANE = 8              # sublane count of an f32 vreg
GROUP_ROWS = 256         # rows folded per inner fori_loop step (bounds live vregs)
MIN_KERNEL_BYTES = 2 << 20  # below this, pure XLA beats a kernel launch


def _round_up(a, b):
    return ((a + b - 1) // b) * b


def _default_num_chunks():
    """Independent grid chunks = TensorCores sharing the chip's HBM."""
    try:
        info = pltpu.get_tpu_info()
        for name in ("num_cores", "core_count", "num_tensorcores",
                     "num_tensor_cores", "tensorcore_count"):
            v = getattr(info, name, None)
            if isinstance(v, int) and 1 <= v <= 8:
                return v
    except Exception:
        pass
    # Harmless default on 1-TC chips (in-kernel masking removed the old
    # padding-granularity penalty); up to ~2x on multi-TC / megacore chips.
    return 2


def _bce_mean_xla(x, y, *, hard_labels=False):
    x = x.astype(jnp.float32)
    y = y.astype(jnp.float32)
    if hard_labels:
        return jnp.mean(-jnp.log(jnp.where(y > 0.5, x, 1.0 - x)))
    return jnp.mean(-y * jnp.log(x) - (1.0 - y) * jnp.log(1.0 - x))


def _make_bce_kernel(*, tr, group, n_groups, K, rows, tail, hard_labels):
    """Build the per-tile partial-sum kernel.

    tr       : rows per tile (multiple of 8, and of `group` when > group)
    group    : rows folded per inner loop step
    n_groups : tr // group
    K        : inner (reduction) grid extent
    rows     : valid rows of the (rows, 128) input slab
    tail     : valid lanes in the last row (0 => last row is full)
    """
    full_rows = rows - 1 if tail else rows  # rows needing no lane masking

    def loss_fn(x, y):
        x = x.astype(jnp.float32)
        y = y.astype(jnp.float32)
        if hard_labels:
            # y in {0,1}: one transcendental per element instead of two.
            return -jnp.log(jnp.where(y > 0.5, x, 1.0 - x))
        return -y * jnp.log(x) - (1.0 - y) * jnp.log1p(-x)

    def fold(loss):
        # (group,128) -> (8,128) partial sums: pure vreg adds, no XLU work.
        return loss.reshape(-1, SUBLANE, LANE).sum(axis=0)

    def kernel(x_ref, y_ref, o_ref):
        p = pl.program_id(0)
        k = pl.program_id(1)

        # Reset the resident per-chunk accumulator on the first reduction step.
        @pl.when(k == 0)
        def _():
            o_ref[...] = jnp.zeros_like(o_ref)

        b = p * K + k          # logical (unclamped) block index
        row_start = b * tr     # first logical row covered by this tile

        def body_full(g, acc):
            r0 = pl.multiple_of(g * group, group)
            x = x_ref[pl.ds(r0, group), :]
            y = y_ref[pl.ds(r0, group), :]
            return acc + fold(loss_fn(x, y))

        def body_masked(g, acc):
            r0 = pl.multiple_of(g * group, group)
            x = x_ref[pl.ds(r0, group), :].astype(jnp.float32)
            y = y_ref[pl.ds(r0, group), :].astype(jnp.float32)
            grow = row_start + r0 + lax.broadcasted_iota(
                jnp.int32, (group, LANE), 0)
            if tail:
                lidx = lax.broadcasted_iota(jnp.int32, (group, LANE), 1)
                m = (grow < (rows - 1)) | ((grow == (rows - 1)) & (lidx < tail))
            else:
                m = grow < rows
            # Sanitize before the logs so masked lanes (stale VMEM / pad) never
            # produce inf/NaN, then zero their contribution.
            xs = jnp.where(m, x, jnp.float32(0.5))
            ys = jnp.where(m, y, jnp.float32(0.5))
            loss = jnp.where(m, loss_fn(xs, ys), jnp.float32(0.0))
            return acc + fold(loss)

        zero = jnp.zeros((SUBLANE, LANE), jnp.float32)
        is_full = (row_start + tr) <= full_rows   # no masking needed for tile

        @pl.when(is_full)
        def _():
            o_ref[...] += lax.fori_loop(0, n_groups, body_full, zero)[None]

        @pl.when(jnp.logical_not(is_full))
        def _():
            o_ref[...] += lax.fori_loop(0, n_groups, body_masked, zero)[None]

    return kernel


def bce_mean(x, y, *, tile_rows=8192, num_chunks=None, hard_labels=False,
             force_kernel=False):
    """mean(-y*log(x) - (1-y)*log(1-x)) over all elements of x, y (same shape)."""
    assert x.shape == y.shape
    total = int(x.size)
    if total == 0:
        return jnp.float32(jnp.nan)

    in_bytes = total * (x.dtype.itemsize + y.dtype.itemsize)
    if not force_kernel and in_bytes < MIN_KERNEL_BYTES:
        # Kernel dispatch + one grid step dominates for tiny inputs.
        return _bce_mean_xla(x, y, hard_labels=hard_labels)

    xf = x.reshape(-1)
    yf = y.reshape(-1)

    rows = pl.cdiv(total, LANE)   # rows of the lane-dense slab
    tail = total % LANE           # valid lanes in the last row (0 => full)
    pad = rows * LANE - total     # <=127 elements; the only copy we ever make
    if pad:
        # Padded lanes are masked out inside the kernel; 0.5 keeps logs finite.
        xf = jnp.pad(xf, (0, pad), constant_values=0.5)
        yf = jnp.pad(yf, (0, pad), constant_values=0.5)
    x2 = xf.reshape(rows, LANE)
    y2 = yf.reshape(rows, LANE)

    if num_chunks is None:
        num_chunks = _default_num_chunks()
    num_chunks = max(1, int(num_chunks))

    # --- tile selection: (8,128)-aligned, group-aligned, never tiny
    tr = min(int(tile_rows), _round_up(pl.cdiv(rows, num_chunks), SUBLANE))
    tr = max(tr, SUBLANE)
    if tr > GROUP_ROWS:
        tr = _round_up(tr, GROUP_ROWS)
    group = min(tr, GROUP_ROWS)
    n_groups = tr // group

    total_blocks = pl.cdiv(rows, tr)
    num_chunks = max(1, min(num_chunks, total_blocks))
    K = pl.cdiv(total_blocks, num_chunks)
    last_block = total_blocks - 1

    kernel = _make_bce_kernel(tr=tr, group=group, n_groups=n_groups, K=K,
                              rows=rows, tail=tail, hard_labels=hard_labels)

    # Excess grid steps (num_chunks*K may exceed total_blocks) are clamped onto
    # the last real block; the kernel masks their contribution to zero.
    def in_map(p, k):
        return (jnp.minimum(p * K + k, last_block), 0)

    tile_bytes = tr * LANE * (x2.dtype.itemsize + y2.dtype.itemsize)
    vmem_limit = int(min(100 * 1024 * 1024,
                         max(32 * 1024 * 1024, 2 * tile_bytes + 8 * 1024 * 1024)))

    partials = pl.pallas_call(
        kernel,
        out_shape=jax.ShapeDtypeStruct((num_chunks, SUBLANE, LANE), jnp.float32),
        grid_spec=pltpu.PrefetchScalarGridSpec(
            num_scalar_prefetch=0,
            grid=(num_chunks, K),
            in_specs=[
                pl.BlockSpec((tr, LANE), in_map),
                pl.BlockSpec((tr, LANE), in_map),
            ],
            # One resident (1,8,128) partial-sum block per parallel chunk.
            out_specs=pl.BlockSpec((1, SUBLANE, LANE), lambda p, k: (p, 0, 0)),
        ),
        compiler_params=pltpu.CompilerParams(
            # Axis 0: independent chunks (sharded across TensorCores on
            # multi-TC / megacore chips; if an xprof trace shows one TC doing
            # all steps on v7x, switch to pltpu.CORE_PARALLEL here).
            # Axis 1: sequential reduction into the resident accumulator.
            dimension_semantics=("parallel", "arbitrary"),
            vmem_limit_bytes=vmem_limit,
        ),
        cost_estimate=pl.CostEstimate(
            flops=5 * total,
            transcendentals=(1 if hard_labels else 2) * total,
            bytes_accessed=in_bytes,
        ),
    )(x2, y2)

    # Tiny final cross-lane reduction + divide in the wrapper.
    return jnp.sum(partials, dtype=jnp.float32) / jnp.float32(total)


def bce_mean_ref(x, y):
    return _bce_mean_xla(x, y)


if __name__ == "__main__":
    key = jax.random.PRNGKey(0)
    k1, k2, k3, k4, k5, k6 = jax.random.split(key, 6)
    eps = 1e-3

    # 1) Spec shape (NCHW 2x4x16x16), hard {0,1} labels; force the kernel path.
    shape1 = (2, 4, 16, 16)
    x1 = jax.random.uniform(k1, shape1, jnp.float32, eps, 1.0 - eps)
    y1 = jax.random.bernoulli(k2, 0.5, shape1).astype(jnp.float32)
    out1 = jax.block_until_ready(bce_mean(x1, y1, force_kernel=True))
    ref1 = jax.block_until_ready(bce_mean_ref(x1, y1))
    assert jnp.allclose(out1, ref1, rtol=1e-5, atol=1e-5), (out1, ref1)

    # Hard-label fast path (one transcendental per element) on the same data.
    out1h = jax.block_until_ready(
        bce_mean(x1, y1, force_kernel=True, hard_labels=True))
    assert jnp.allclose(out1h, ref1, rtol=1e-5, atol=1e-5), (out1h, ref1)

    # Small-input XLA fallback (no kernel launch).
    out1f = jax.block_until_ready(bce_mean(x1, y1))
    assert jnp.allclose(out1f, ref1, rtol=1e-5, atol=1e-5), (out1f, ref1)

    # 2) Ragged element count (not a multiple of 128): in-kernel tail masking.
    shape2 = (3, 5, 37, 41)
    x2 = jax.random.uniform(k3, shape2, jnp.float32, eps, 1.0 - eps)
    y2 = jax.random.uniform(k4, shape2, jnp.float32)   # soft labels
    out2 = jax.block_until_ready(bce_mean(x2, y2, force_kernel=True))
    ref2 = jax.block_until_ready(bce_mean_ref(x2, y2))
    assert jnp.allclose(out2, ref2, rtol=1e-5, atol=1e-5), (out2, ref2)

    # 3) Multi-step reduction grid (small tiles) + clamped excess grid steps.
    shape3 = (1, 7, 33, 129)
    x3 = jax.random.uniform(k5, shape3, jnp.float32, eps, 1.0 - eps)
    y3 = jax.random.uniform(k6, shape3, jnp.float32)
    out3 = jax.block_until_ready(bce_mean(x3, y3, force_kernel=True, tile_rows=16))
    ref3 = jax.block_until_ready(bce_mean_ref(x3, y3))
    assert jnp.allclose(out3, ref3, rtol=1e-5, atol=1e-5), (out3, ref3)

    print("KERNEL_OK")
</pallas_src>

<mosaic_0001>
module attributes {stable_mosaic.version = 11 : i64} {
  func.func @kernel(%arg0: i32, %arg1: i32, %arg2: memref<8x128xf32, #tpu.memory_space<vmem>>, %arg3: memref<8x128xf32, #tpu.memory_space<vmem>>, %arg4: memref<1x8x128xf32, #tpu.memory_space<vmem>>) attributes {dimension_semantics = [#tpu.dimension_semantics<parallel>, #tpu.dimension_semantics<arbitrary>], iteration_bounds = array<i64: 2, 1>, scalar_prefetch = 0 : i64, scratch_operands = 0 : i64, tpu.core_type = #tpu.core_type<tc>, window_params = [{transform_indices = @transform_0, window_bounds = array<i64: 8, 128>}, {transform_indices = @transform_1, window_bounds = array<i64: 8, 128>}, {transform_indices = @transform_2, window_bounds = array<i64: 1, 8, 128>}]} {
    %c0_i32 = arith.constant 0 : i32
    %0 = arith.cmpi eq, %arg1, %c0_i32 : i32
    %1 = arith.extui %0 : i1 to i32
    %c0_i32_0 = arith.constant 0 : i32
    %2 = arith.cmpi ne, %1, %c0_i32_0 : i32
    scf.if %2 {
      %cst_4 = arith.constant 0.000000e+00 : f32
      %14 = vector.broadcast %cst_4 : f32 to vector<1x8x128xf32>
      %c0 = arith.constant 0 : index
      %c0_5 = arith.constant 0 : index
      %c0_6 = arith.constant 0 : index
      %15 = vector.load %arg4[%c0, %c0_5, %c0_6] : memref<1x8x128xf32, #tpu.memory_space<vmem>>, vector<1x8x128xf32>
      tpu.vector_store %arg4[%c0, %c0_5, %c0_6], %14 {strides = array<i32>} : memref<1x8x128xf32, #tpu.memory_space<vmem>>, vector<1x8x128xf32>,
    } else {
    }
    %c1_i32 = arith.constant 1 : i32
    %3 = arith.muli %arg0, %c1_i32 : i32
    %4 = arith.addi %3, %arg1 : i32
    %c8_i32 = arith.constant 8 : i32
    %5 = arith.muli %4, %c8_i32 : i32
    %cst = arith.constant 0.000000e+00 : f32
    %6 = vector.broadcast %cst : f32 to vector<8x128xf32>
    %c8_i32_1 = arith.constant 8 : i32
    %7 = arith.addi %5, %c8_i32_1 : i32
    %c16_i32 = arith.constant 16 : i32
    %8 = arith.cmpi sle, %7, %c16_i32 : i32
    %9 = arith.extui %8 : i1 to i32
    %c0_i32_2 = arith.constant 0 : i32
    %10 = arith.cmpi ne, %9, %c0_i32_2 : i32
    scf.if %10 {
      %c0 = arith.constant 0 : index
      %c0_4 = arith.constant 0 : index
      %c0_5 = arith.constant 0 : index
      %14 = vector.load %arg4[%c0, %c0_4, %c0_5] : memref<1x8x128xf32, #tpu.memory_space<vmem>>, vector<1x8x128xf32>
      %c0_i32_6 = arith.constant 0 : i32
      %c8_i32_7 = arith.constant 8 : i32
      %15 = arith.muli %c0_i32_6, %c8_i32_7 : i32
      %16 = tpu.assume_multiple %15, 8 : i32
      %17 = arith.index_cast %16 : i32 to index
      %c0_8 = arith.constant 0 : index
      %18 = vector.load %arg2[%17, %c0_8] : memref<8x128xf32, #tpu.memory_space<vmem>>, vector<8x128xf32>
      %19 = arith.index_cast %16 : i32 to index
      %c0_9 = arith.constant 0 : index
      %20 = vector.load %arg3[%19, %c0_9] : memref<8x128xf32, #tpu.memory_space<vmem>>, vector<8x128xf32>
      %cst_10 = arith.constant 0.000000e+00 : f32
      %21 = vector.broadcast %cst_10 : f32 to vector<8x128xf32>
      %22 = arith.subf %21, %20 : vector<8x128xf32>
      %23 = math.log %18 : vector<8x128xf32>
      %24 = arith.mulf %22, %23 : vector<8x128xf32>
      %cst_11 = arith.constant 1.000000e+00 : f32
      %25 = vector.broadcast %cst_11 : f32 to vector<8x128xf32>
      %26 = arith.subf %25, %20 : vector<8x128xf32>
      %cst_12 = arith.constant 0.000000e+00 : f32
      %27 = vector.broadcast %cst_12 : f32 to vector<8x128xf32>
      %28 = arith.subf %27, %18 : vector<8x128xf32>
      %29 = math.log1p %28 : vector<8x128xf32>
      %30 = arith.mulf %26, %29 : vector<8x128xf32>
      %31 = arith.subf %24, %30 : vector<8x128xf32>
      %32 = vector.shape_cast %31 : vector<8x128xf32> to vector<1x8x128xf32>
      %cst_13 = arith.constant dense<0.000000e+00> : vector<8x128xf32>
      %33 = vector.multi_reduction <add>, %32, %cst_13 [0] : vector<1x8x128xf32> to vector<8x128xf32>
      %34 = arith.addf %6, %33 : vector<8x128xf32>
      %c1_i32_14 = arith.constant 1 : i32
      %35 = vector.shape_cast %34 : vector<8x128xf32> to vector<1x8x128xf32>
      %36 = arith.addf %14, %35 : vector<1x8x128xf32>
      %c0_15 = arith.constant 0 : index
      %c0_16 = arith.constant 0 : index
      %c0_17 = arith.constant 0 : index
      %37 = vector.load %arg4[%c0_15, %c0_16, %c0_17] : memref<1x8x128xf32, #tpu.memory_space<vmem>>, vector<1x8x128xf32>
      tpu.vector_store %arg4[%c0_15, %c0_16, %c0_17], %36 {strides = array<i32>} : memref<1x8x128xf32, #tpu.memory_space<vmem>>, vector<1x8x128xf32>,
    } else {
    }
    %true = arith.constant true
    %11 = arith.xori %8, %true : i1
    %12 = arith.extui %11 : i1 to i32
    %c0_i32_3 = arith.constant 0 : i32
    %13 = arith.cmpi ne, %12, %c0_i32_3 : i32
    scf.if %13 {
      %c0 = arith.constant 0 : index
      %c0_4 = arith.constant 0 : index
      %c0_5 = arith.constant 0 : index
      %14 = vector.load %arg4[%c0, %c0_4, %c0_5] : memref<1x8x128xf32, #tpu.memory_space<vmem>>, vector<1x8x128xf32>
      %c0_i32_6 = arith.constant 0 : i32
      %c8_i32_7 = arith.constant 8 : i32
      %15 = arith.muli %c0_i32_6, %c8_i32_7 : i32
      %16 = tpu.assume_multiple %15, 8 : i32
      %17 = arith.index_cast %16 : i32 to index
      %c0_8 = arith.constant 0 : index
      %18 = vector.load %arg2[%17, %c0_8] : memref<8x128xf32, #tpu.memory_space<vmem>>, vector<8x128xf32>
      %19 = arith.index_cast %16 : i32 to index
      %c0_9 = arith.constant 0 : index
      %20 = vector.load %arg3[%19, %c0_9] : memref<8x128xf32, #tpu.memory_space<vmem>>, vector<8x128xf32>
      %21 = arith.addi %5, %16 : i32
      %22 = tpu.iota {dimensions = array<i32: 0>} : vector<8x128xi32>
      %23 = vector.broadcast %21 : i32 to vector<8x128xi32>
      %24 = arith.addi %23, %22 : vector<8x128xi32>
      %c16_i32_10 = arith.constant 16 : i32
      %25 = vector.broadcast %c16_i32_10 : i32 to vector<8x128xi32>
      %26 = arith.cmpi slt, %24, %25 : vector<8x128xi32>
      %cst_11 = arith.constant 5.000000e-01 : f32
      %27 = vector.broadcast %cst_11 : f32 to vector<8x128xf32>
      %28 = arith.select %26, %18, %27 : vector<8x128xi1>, vector<8x128xf32>
      %cst_12 = arith.constant 5.000000e-01 : f32
      %29 = vector.broadcast %cst_12 : f32 to vector<8x128xf32>
      %30 = arith.select %26, %20, %29 : vector<8x128xi1>, vector<8x128xf32>
      %cst_13 = arith.constant 0.000000e+00 : f32
      %31 = vector.broadcast %cst_13 : f32 to vector<8x128xf32>
      %32 = arith.subf %31, %30 : vector<8x128xf32>
      %33 = math.log %28 : vector<8x128xf32>
      %34 = arith.mulf %32, %33 : vector<8x128xf32>
      %cst_14 = arith.constant 1.000000e+00 : f32
      %35 = vector.broadcast %cst_14 : f32 to vector<8x128xf32>
      %36 = arith.subf %35, %30 : vector<8x128xf32>
      %cst_15 = arith.constant 0.000000e+00 : f32
      %37 = vector.broadcast %cst_15 : f32 to vector<8x128xf32>
      %38 = arith.subf %37, %28 : vector<8x128xf32>
      %39 = math.log1p %38 : vector<8x128xf32>
      %40 = arith.mulf %36, %39 : vector<8x128xf32>
      %41 = arith.subf %34, %40 : vector<8x128xf32>
      %cst_16 = arith.constant 0.000000e+00 : f32
      %42 = vector.broadcast %cst_16 : f32 to vector<8x128xf32>
      %43 = arith.select %26, %41, %42 : vector<8x128xi1>, vector<8x128xf32>
      %44 = vector.shape_cast %43 : vector<8x128xf32> to vector<1x8x128xf32>
      %cst_17 = arith.constant dense<0.000000e+00> : vector<8x128xf32>
      %45 = vector.multi_reduction <add>, %44, %cst_17 [0] : vector<1x8x128xf32> to vector<8x128xf32>
      %46 = arith.addf %6, %45 : vector<8x128xf32>
      %c1_i32_18 = arith.constant 1 : i32
      %47 = vector.shape_cast %46 : vector<8x128xf32> to vector<1x8x128xf32>
      %48 = arith.addf %14, %47 : vector<1x8x128xf32>
      %c0_19 = arith.constant 0 : index
      %c0_20 = arith.constant 0 : index
      %c0_21 = arith.constant 0 : index
      %49 = vector.load %arg4[%c0_19, %c0_20, %c0_21] : memref<1x8x128xf32, #tpu.memory_space<vmem>>, vector<1x8x128xf32>
      tpu.vector_store %arg4[%c0_19, %c0_20, %c0_21], %48 {strides = array<i32>} : memref<1x8x128xf32, #tpu.memory_space<vmem>>, vector<1x8x128xf32>,
    } else {
    }
    return
  }
  func.func @transform_0(%arg0: i32, %arg1: i32) -> (i32, i32) {
    %c1_i32 = arith.constant 1 : i32
    %0 = arith.muli %arg0, %c1_i32 : i32
    %1 = arith.addi %0, %arg1 : i32
    %c1_i32_0 = arith.constant 1 : i32
    %2 = arith.minsi %1, %c1_i32_0 : i32
    %c0_i32 = arith.constant 0 : i32
    %c0_i32_1 = arith.constant 0 : i32
    return %2, %c0_i32 : i32, i32
  }
  func.func @transform_1(%arg0: i32, %arg1: i32) -> (i32, i32) {
    %c1_i32 = arith.constant 1 : i32
    %0 = arith.muli %arg0, %c1_i32 : i32
    %1 = arith.addi %0, %arg1 : i32
    %c1_i32_0 = arith.constant 1 : i32
    %2 = arith.minsi %1, %c1_i32_0 : i32
    %c0_i32 = arith.constant 0 : i32
    %c0_i32_1 = arith.constant 0 : i32
    return %2, %c0_i32 : i32, i32
  }
  func.func @transform_2(%arg0: i32, %arg1: i32) -> (i32, i32, i32) {
    %c0_i32 = arith.constant 0 : i32
    %c0_i32_0 = arith.constant 0 : i32
    %c0_i32_1 = arith.constant 0 : i32
    return %arg0, %c0_i32, %c0_i32_0 : i32, i32, i32
  }
}

</mosaic_0001>

<llo_original>
// kernel: tpu_custom_call.1
$region0: #{tpu_custom_call.1}
  #allocation0 [shape = 'u32[]', space=smem, size = 0x4, offset = 0x4, fixed_abs, tag = 'smem constant byte address 0x4 - core index']
  #allocation1 [shape = 'u32[144,128]{1,0:T(1,128)}', space=vmem, size = 0x12000, scoped, tag = 'internal scratch']
  %s0 = inlined_call_operand.hbm [shape: f32[16,128], index: 0, kind: input, shape index: {}]
  %s1 = inlined_call_operand.hbm [shape: f32[16,128], index: 1, kind: input, shape index: {}]
  %s2 = inlined_call_operand.hbm [shape: f32[2,8,128], index: 2, kind: output, shape index: {}]
  %s3 = sld [smem:[#allocation0]]
  $region61: #{tpu_custom_call.1} parent=0
    _
  %s5 = ssub.s32 1, %s3
  %s6 = scalar_select 0, %s5, %s3
  $region1: #{tpu_custom_call.1} parent=0
    #allocation2 [shape = 'u8[8192]{0}', space=vmem, size = 0x2000, scoped, tag = 'input window, operand 0']
    #allocation3 [shape = 's32[2]{0}', space=sflag, size = 0x8, scoped, tag = 'scoped memory for tpu_custom_call.1']
    #allocation4 [shape = 's32[2]{0}', space=sflag, size = 0x8, scoped, tag = 'scoped memory for tpu_custom_call.1']
    #allocation5 [shape = 'u8[8192]{0}', space=vmem, size = 0x2000, scoped, tag = 'input window, operand 1']
    #allocation6 [shape = 's32[2]{0}', space=sflag, size = 0x8, scoped, tag = 'scoped memory for tpu_custom_call.1']
    #allocation7 [shape = 'u8[8192]{0}', space=vmem, size = 0x2000, scoped, tag = 'output window, operand 0']
    %7 = vsyncpa [#allocation3], 0
    %s8 = scalar_lea.sflag [#allocation3], 1
    %9 = vsyncpa %s8, 0
    %10 = vsyncpa [#allocation6], 0
    %s11 = scalar_lea.sflag [#allocation6], 1
    %12 = vsyncpa %s11, 0
    %13 = vsyncpa [#allocation4], 0
    %s14 = scalar_lea.sflag [#allocation4], 1
    %15 = vsyncpa %s14, 0
    loop: start=0, step=1, limit=4
    $region2: #{tpu_custom_call.1} parent=1 // loop_pre_header
      _
    $region3: #{tpu_custom_call.1} parent=1 // loop_header
      %s17 = sphi 0, %s21
      %p18 = scmp.ge.s32.totalorder %s17, 4
      %s24 = sphi 0, %s36
      %s25 = sphi 0, %s32
      %s26 = sphi 0, %s24
      %s27 = sphi 0, %s25
      %s28 = sphi 0, %s26
      %s29 = sphi 0, %s27
      %s45 = sphi 0, %s47
      %s48 = sphi 0, %s45
      %s49 = sphi 0, %s48
      %s65 = sphi 0, %s49
      %s77 = sphi 0, %s79
      %s80 = sphi 0, %s77
      %s81 = sphi 0, %s80
      %s97 = sphi 0, %s81
      %s103 = sphi 0, %s105
      %s106 = sphi 0, %s103
      %s107 = sphi 0, %s106
      %s123 = sphi 0, %s107
    $region4: #{tpu_custom_call.1} parent=1 // loop_header_branch
      %20 = sbr.rel (%p18) target = $region8
    $region5: #{tpu_custom_call.1} parent=1 // loop_body
      %s22 = ssub.s32 %s17, 1
      %s23 = ssub.s32 %s17, 2
      %s30 = sadd.s32 1, %s25
      %p31 = scmp.ge.s32.totalorder %s30, 1
      %s32 = scalar_select %p31, 0, %s30
      %s33 = sadd.s32 1, %s24
      %s34 = scalar_select %p31, %s33, %s24
      %p35 = scmp.ge.s32.totalorder %s34, 2
      %s36 = scalar_select %p35, 0, %s34
      %s37 = sadd.s32 %s24, %s25
      %p38 = scmp.lt.s32.totalorder %s37, 1
      %s39 = scalar_select %p38, %s37, 1
      %s40 = sadd.s32 %s36, %s32
      %p41 = scmp.lt.s32.totalorder %s40, 1
      %s42 = scalar_select %p41, %s40, 1
      %s43 = ssub.s32 %s39, %s42
      %p44 = scmp.eq.s32.totalorder %s43, 0
      %s46 = sadd.s32 %s45, 1
      %s47 = scalar_select %p44, %s45, %s46
      %p50 = pneg %p44
      %p51 = scmp.eq.s32.totalorder %s17, 1
      %p52 = por %p50, %p51
      %p53 = scmp.ne.s32.totalorder %s45, %s48
      %p54 = scmp.eq.s32.totalorder %s17, 0
      %p55 = por %p53, %p54
      %p56 = scmp.ne.s32.totalorder %s45, %s48
      %p57 = scmp.eq.s32.totalorder %s22, 1
      %p58 = por %p56, %p57
      %p59 = scmp.ne.s32.totalorder %s48, %s49
      %p60 = scmp.eq.s32.totalorder %s22, 0
      %p61 = por %p59, %p60
      %p62 = scmp.ne.s32.totalorder %s48, %s49
      %p63 = scmp.eq.s32.totalorder %s23, 1
      %p64 = por %p62, %p63
      %p66 = scmp.ne.s32.totalorder %s49, %s65
      %p67 = scmp.eq.s32.totalorder %s23, 0
      %p68 = por %p66, %p67
      %s69 = sadd.s32 %s24, %s25
      %p70 = scmp.lt.s32.totalorder %s69, 1
      %s71 = scalar_select %p70, %s69, 1
      %s72 = sadd.s32 %s36, %s32
      %p73 = scmp.lt.s32.totalorder %s72, 1
      %s74 = scalar_select %p73, %s72, 1
      %s75 = ssub.s32 %s71, %s74
      %p76 = scmp.eq.s32.totalorder %s75, 0
      %s78 = sadd.s32 %s77, 1
      %s79 = scalar_select %p76, %s77, %s78
      %p82 = pneg %p76
      %p83 = scmp.eq.s32.totalorder %s17, 1
      %p84 = por %p82, %p83
      %p85 = scmp.ne.s32.totalorder %s77, %s80
      %p86 = scmp.eq.s32.totalorder %s17, 0
      %p87 = por %p85, %p86
      %p88 = scmp.ne.s32.totalorder %s77, %s80
      %p89 = scmp.eq.s32.totalorder %s22, 1
      %p90 = por %p88, %p89
      %p91 = scmp.ne.s32.totalorder %s80, %s81
      %p92 = scmp.eq.s32.totalorder %s22, 0
      %p93 = por %p91, %p92
      %p94 = scmp.ne.s32.totalorder %s80, %s81
      %p95 = scmp.eq.s32.totalorder %s23, 1
      %p96 = por %p94, %p95
      %p98 = scmp.ne.s32.totalorder %s81, %s97
      %p99 = scmp.eq.s32.totalorder %s23, 0
      %p100 = por %p98, %p99
      %s101 = ssub.s32 %s24, %s36
      %p102 = scmp.eq.s32.totalorder %s101, 0
      %s104 = sadd.s32 %s103, 1
      %s105 = scalar_select %p102, %s103, %s104
      %p108 = pneg %p102
      %p109 = scmp.eq.s32.totalorder %s17, 1
      %p110 = por %p108, %p109
      %p111 = scmp.ne.s32.totalorder %s103, %s106
      %p112 = scmp.eq.s32.totalorder %s17, 0
      %p113 = por %p111, %p112
      %p114 = scmp.ne.s32.totalorder %s103, %s106
      %p115 = scmp.eq.s32.totalorder %s22, 1
      %p116 = por %p114, %p115
      %p117 = scmp.ne.s32.totalorder %s106, %s107
      %p118 = scmp.eq.s32.totalorder %s22, 0
      %p119 = por %p117, %p118
      %p120 = scmp.ne.s32.totalorder %s106, %s107
      %p121 = scmp.eq.s32.totalorder %s23, 1
      %p122 = por %p120, %p121
      %p124 = scmp.ne.s32.totalorder %s107, %s123
      %p125 = scmp.eq.s32.totalorder %s23, 0
      %p126 = por %p124, %p125
      %p127 = scmp.le.s32.totalorder 1, %s17
      %p128 = scmp.lt.s32.totalorder %s17, 3
      %p129 = pnand %p127, %p128
      %p130 = pneg %p129
      // Predicated region
      $region9: #{tpu_custom_call.1} parent=5 // pred_check
        _
      $region10: #{tpu_custom_call.1} parent=5 // pred_check_branch
        %132 = sbr.rel (%p129) target = $region12
      $region11: #{tpu_custom_call.1} parent=5 // pred_region
        %s133 = ssub.s32 %s17, 1
      $region12: #{tpu_custom_call.1} parent=5 // pred_fallthru
        _
      %p134 = scmp.lt.s32.totalorder %s17, 2
      // Predicated region
      $region13: #{tpu_custom_call.1} parent=5 // pred_check
        %p135 = pneg %p134
      $region14: #{tpu_custom_call.1} parent=5 // pred_check_branch
        %137 = sbr.rel (%p135) target = $region16
      $region15: #{tpu_custom_call.1} parent=5 // pred_region
        // Predicated region
        $region17: #{tpu_custom_call.1} parent=15 // pred_check
          %p138 = pneg %p55
        $region18: #{tpu_custom_call.1} parent=15 // pred_check_branch
          %140 = sbr.rel (%p138) target = $region20
        $region19: #{tpu_custom_call.1} parent=15 // pred_region
          %s141 = sand.u32 %s45, 1
          %s142 = scalar_lea.sflag [#allocation3], %s141
          %s143 = sand.u32 %s45, 1
          %s144 = smul.addr %s143, 8
          %s145 = scalar_lea.vmem [#allocation2], %s144
          %s146 = sadd.s32 %s24, %s25
          %p147 = scmp.lt.s32.totalorder %s146, 1
          %s148 = scalar_select %p147, %s146, 1
          %s150 = ssub.s32 128, 128
          %151 = vsyncadd %s142, %s150
          %s152 = smul.addr %s148, 128
          %s153 = scalar_lea.hbm %s0, %s152
          %s155 = sshll.u32 %s145, 4
          %s156 = int_to_ptr.vmem [resolvable:$true] %s155
          %158 = dma.hbm_to_vmem [thread:$0]  %s153, 128, %s156, %s142
        $region20: #{tpu_custom_call.1} parent=15 // pred_fallthru
          _
        // Predicated region
        $region21: #{tpu_custom_call.1} parent=15 // pred_check
          %p159 = pneg %p87
        $region22: #{tpu_custom_call.1} parent=15 // pred_check_branch
          %161 = sbr.rel (%p159) target = $region24
        $region23: #{tpu_custom_call.1} parent=15 // pred_region
          %s162 = sand.u32 %s77, 1
          %s163 = scalar_lea.sflag [#allocation6], %s162
          %s164 = sand.u32 %s77, 1
          %s165 = smul.addr %s164, 8
          %s166 = scalar_lea.vmem [#allocation5], %s165
          %s167 = sadd.s32 %s24, %s25
          %p168 = scmp.lt.s32.totalorder %s167, 1
          %s169 = scalar_select %p168, %s167, 1
          %s171 = ssub.s32 128, 128
          %172 = vsyncadd %s163, %s171
          %s173 = smul.addr %s169, 128
          %s174 = scalar_lea.hbm %s1, %s173
          %s176 = sshll.u32 %s166, 4
          %s177 = int_to_ptr.vmem [resolvable:$true] %s176
          %179 = dma.hbm_to_vmem [thread:$0]  %s174, 128, %s177, %s163
        $region24: #{tpu_custom_call.1} parent=15 // pred_fallthru
          _
      $region16: #{tpu_custom_call.1} parent=5 // pred_fallthru
        _
      %p180 = scmp.le.s32.totalorder 1, %s17
      %p181 = scmp.lt.s32.totalorder %s17, 3
      %p182 = pnand %p180, %p181
      %p183 = pneg %p182
      // Predicated region
      $region25: #{tpu_custom_call.1} parent=5 // pred_check
        _
      $region26: #{tpu_custom_call.1} parent=5 // pred_check_branch
        %185 = sbr.rel (%p182) target = $region28
      $region27: #{tpu_custom_call.1} parent=5 // pred_region
        %s186 = ssub.s32 %s17, 1
        %s187 = sand.u32 %s48, 1
        %s188 = scalar_lea.sflag [#allocation3], %s187
        %s189 = sand.u32 %s48, 1
        %s190 = smul.addr %s189, 8
        %s191 = scalar_lea.vmem [#allocation2], %s190
        // Predicated region
        $region29: #{tpu_custom_call.1} parent=27 // pred_check
          %p192 = pneg %p61
        $region30: #{tpu_custom_call.1} parent=27 // pred_check_branch
          %194 = sbr.rel (%p192) target = $region32
        $region31: #{tpu_custom_call.1} parent=27 // pred_region
          %195 = dma.done %s188, 128
        $region32: #{tpu_custom_call.1} parent=27 // pred_fallthru
          _
        %s196 = sand.u32 %s80, 1
        %s197 = scalar_lea.sflag [#allocation6], %s196
        %s198 = sand.u32 %s80, 1
        %s199 = smul.addr %s198, 8
        %s200 = scalar_lea.vmem [#allocation5], %s199
        // Predicated region
        $region33: #{tpu_custom_call.1} parent=27 // pred_check
          %p201 = pneg %p93
        $region34: #{tpu_custom_call.1} parent=27 // pred_check_branch
          %203 = sbr.rel (%p201) target = $region36
        $region35: #{tpu_custom_call.1} parent=27 // pred_region
          %204 = dma.done %s197, 128
        $region36: #{tpu_custom_call.1} parent=27 // pred_fallthru
          _
        %s205 = sand.u32 %s48, 1
        %s206 = scalar_lea.sflag [#allocation3], %s205
        %s207 = sand.u32 %s48, 1
        %s208 = smul.addr %s207, 8
        %s209 = scalar_lea.vmem [#allocation2], %s208
        %p210 = pneg %p61
        %p211 = pneg %p58
        %s212 = sand.u32 %s80, 1
        %s213 = scalar_lea.sflag [#allocation6], %s212
        %s214 = sand.u32 %s80, 1
        %s215 = smul.addr %s214, 8
        %s216 = scalar_lea.vmem [#allocation5], %s215
        %p217 = pneg %p93
        %p218 = pneg %p90
        %p219 = pneg %p119
        %p220 = pneg %p116
        %s221 = sand.u32 %s106, 1
        %s222 = scalar_lea.sflag [#allocation4], %s221
        %s223 = sand.u32 %s106, 1
        %s224 = smul.addr %s223, 8
        %s225 = scalar_lea.vmem [#allocation7], %s224
        %s226 = sadd.s32 %s26, %s27
        %p227 = scmp.lt.s32.totalorder %s226, 1
        %s228 = scalar_select %p227, %s226, 1
        %s229 = sadd.s32 %s26, %s27
        %p230 = scmp.lt.s32.totalorder %s229, 1
        %s231 = scalar_select %p230, %s229, 1
        %p232 = scmp.eq.s32.totalorder %s27, 0
        // Predicated region
        $region37: #{tpu_custom_call.1} parent=27 // pred_check
          %p233 = pneg %p232
        $region38: #{tpu_custom_call.1} parent=27 // pred_check_branch
          %235 = sbr.rel (%p233) target = $region40
        $region39: #{tpu_custom_call.1} parent=27 // pred_region
          %236 = vst [vmem:[%s225] sm:$0xff] 0.0
        $region40: #{tpu_custom_call.1} parent=27 // pred_fallthru
          _
        %s237 = sadd.s32 %s26, %s27
        %s238 = smul.u32 %s237, 8
        %s239 = sadd.s32 %s238, 8
        %p240 = scmp.le.s32.totalorder %s239, 16
        // Predicated region
        $region41: #{tpu_custom_call.1} parent=27 // pred_check
          %p241 = pneg %p240
        $region42: #{tpu_custom_call.1} parent=27 // pred_check_branch
          %243 = sbr.rel (%p241) target = $region44
        $region43: #{tpu_custom_call.1} parent=27 // pred_region
          %v244 = vld [vmem:[%s225] sm:$0xff]
          %v245 = vld [vmem:[%s191] sm:$0xff]
          %v246 = vld [vmem:[%s200] sm:$0xff]
          %v247 = vsub.f32 0.0, %v246
          %v248 = vlog2.pop %v245
          %v249 = vmul.f32 %v248, 0.6931472
          %v250 = vmul.f32 %v247, %v249
          %v251 = vsub.f32 1.0, %v246
          %v252 = vsub.f32 0.0, %v245
          %v253 = vadd.f32 %v252, 1.0
          %v254 = vlog2.pop %v253
          %v255 = vmul.f32 %v254, 0.6931472
          %v256 = vmul.f32 -0.5, %v252
          %v257 = vadd.f32 %v256, 1.0
          %v258 = vmul.f32 %v257, %v252
          %v259 = vand.u32 2147483647, %v252
          %vm260 = vcmp.lt.f32.partialorder %v259, 0.0004427343
          %v261 = vsel %vm260, %v258, %v255
          %v262 = vmul.f32 %v251, %v261
          %v263 = vsub.f32 %v250, %v262
          %v264 = vadd.f32 %v263, 0.0
          %v265 = vadd.f32 %v264, 0.0
          %v266 = vadd.f32 %v244, %v265
          %267 = vst [vmem:[%s225] sm:$0xff] %v266
        $region44: #{tpu_custom_call.1} parent=27 // pred_fallthru
          _
        %p268 = scmp.gt.s32.totalorder %s239, 16
        // Predicated region
        $region45: #{tpu_custom_call.1} parent=27 // pred_check
          %p269 = pneg %p268
        $region46: #{tpu_custom_call.1} parent=27 // pred_check_branch
          %271 = sbr.rel (%p269) target = $region48
        $region47: #{tpu_custom_call.1} parent=27 // pred_region
          %v272 = vld [vmem:[%s225] sm:$0xff]
          %v273 = vld [vmem:[%s191] sm:$0xff]
          %v274 = vld [vmem:[%s200] sm:$0xff]
          %s275 = sadd.s32 %s238, 0
          %v276 = vlaneseq
          %v277 = vshrl.u32 %v276, 7
          %v278 = vstv %s275
          %v279 = vadd.s32 %v278, %v277
          %vm280 = vcmp.lt.s32.totalorder %v279, 16
          %v281 = vsel %vm280, %v273, 0.5
          %v282 = vsel %vm280, %v274, 0.5
          %v283 = vsub.f32 0.0, %v282
          %v284 = vlog2.pop %v281
          %v285 = vmul.f32 %v284, 0.6931472
          %v286 = vmul.f32 %v283, %v285
          %v287 = vsub.f32 1.0, %v282
          %v288 = vsub.f32 0.0, %v281
          %v289 = vadd.f32 %v288, 1.0
          %v290 = vlog2.pop %v289
          %v291 = vmul.f32 %v290, 0.6931472
          %v292 = vmul.f32 -0.5, %v288
          %v293 = vadd.f32 %v292, 1.0
          %v294 = vmul.f32 %v293, %v288
          %v295 = vand.u32 2147483647, %v288
          %vm296 = vcmp.lt.f32.partialorder %v295, 0.0004427343
          %v297 = vsel %vm296, %v294, %v291
          %v298 = vmul.f32 %v287, %v297
          %v299 = vsub.f32 %v286, %v298
          %v300 = vsel %vm280, %v299, 0.0
          %v301 = vadd.f32 %v300, 0.0
          %v302 = vadd.f32 %v301, 0.0
          %v303 = vadd.f32 %v272, %v302
          %304 = vst [vmem:[%s225] sm:$0xff] %v303
        $region48: #{tpu_custom_call.1} parent=27 // pred_fallthru
          _
        %s305 = sand.u32 %s106, 1
        %s306 = scalar_lea.sflag [#allocation4], %s305
        %s307 = sand.u32 %s106, 1
        %s308 = smul.addr %s307, 8
        %s309 = scalar_lea.vmem [#allocation7], %s308
        // Predicated region
        $region49: #{tpu_custom_call.1} parent=27 // pred_check
          %p310 = pneg %p116
        $region50: #{tpu_custom_call.1} parent=27 // pred_check_branch
          %312 = sbr.rel (%p310) target = $region52
        $region51: #{tpu_custom_call.1} parent=27 // pred_region
          %s314 = ssub.s32 128, 128
          %315 = vsyncadd %s306, %s314
          %s316 = smul.addr %s26, 128
          %s317 = scalar_lea.hbm %s2, %s316
          %s319 = sshll.u32 %s309, 4
          %s320 = int_to_ptr.vmem [resolvable:$true] %s319
          %322 = dma.vmem_to_hbm [thread:$0]  %s320, 128, %s317, %s306
        $region52: #{tpu_custom_call.1} parent=27 // pred_fallthru
          _
      $region28: #{tpu_custom_call.1} parent=5 // pred_fallthru
        _
      %p323 = scmp.le.s32.totalorder 2, %s17
      // Predicated region
      $region53: #{tpu_custom_call.1} parent=5 // pred_check
        %p324 = pneg %p323
      $region54: #{tpu_custom_call.1} parent=5 // pred_check_branch
        %326 = sbr.rel (%p324) target = $region56
      $region55: #{tpu_custom_call.1} parent=5 // pred_region
        %s327 = ssub.s32 %s17, 2
        // Predicated region
        $region57: #{tpu_custom_call.1} parent=55 // pred_check
          %p328 = pneg %p122
        $region58: #{tpu_custom_call.1} parent=55 // pred_check_branch
          %330 = sbr.rel (%p328) target = $region60
        $region59: #{tpu_custom_call.1} parent=55 // pred_region
          %s331 = sand.u32 %s107, 1
          %s332 = scalar_lea.sflag [#allocation4], %s331
          %s333 = sand.u32 %s107, 1
          %s334 = smul.addr %s333, 8
          %s335 = scalar_lea.vmem [#allocation7], %s334
          %336 = dma.done %s332, 128
        $region60: #{tpu_custom_call.1} parent=55 // pred_fallthru
          _
      $region56: #{tpu_custom_call.1} parent=5 // pred_fallthru
        _
    $region6: #{tpu_custom_call.1} parent=1 // loop_footer
      %s21 = sadd.s32 1, %s17
    $region7: #{tpu_custom_call.1} parent=1 // loop_footer_branch
      %16 = sbr.rel target = $region3
    $region8: #{tpu_custom_call.1} parent=1 // loop_exit
      _
    %337 = vsyncpa [#allocation3], 1
    %s338 = scalar_lea.sflag [#allocation3], 1
    %339 = vsyncpa %s338, 1
    %340 = vsyncpa [#allocation6], 1
    %s341 = scalar_lea.sflag [#allocation6], 1
    %342 = vsyncpa %s341, 1
    %343 = vsyncpa [#allocation4], 1
    %s344 = scalar_lea.sflag [#allocation4], 1
    %345 = vsyncpa %s344, 1

</llo_original>
